<compile_context>
chip_gen: v5e
topology: v5e:2x2
jax: 0.10.0
libtpu: 0.0.40
codegen_flags: <defaults>
</compile_context>

<pallas_src>
import functools

import jax
import jax.numpy as jnp
from jax import lax
from jax.experimental import pallas as pl
from jax.experimental.pallas import tpu as pltpu

EPS = 1e-5
MOMENTUM = 0.9


# ---------------------------------------------------------------------------
# Generation-aware budgets
# ---------------------------------------------------------------------------
def _detect_vmem_capacity_bytes():
    try:
        cap = getattr(pltpu.get_tpu_info(), "vmem_capacity_bytes", None)
        if cap:
            return int(cap)
    except Exception:
        pass
    return 64 * 1024 * 1024  # conservative default (v7x-sized)


def _vmem_limit_and_tile_budget():
    cap = _detect_vmem_capacity_bytes()
    if cap >= 100 * 1024 * 1024:                 # v5e / v6e: 128 MiB physical VMEM
        return 96 * 1024 * 1024, 8 * 1024 * 1024
    return 48 * 1024 * 1024, 5 * 1024 * 1024     # v7x: 64 MiB physical


def _sublane_multiple(itemsize):
    # packed sublane granularity: f32 -> 8, bf16 -> 16, int8/fp8 -> 32
    return {4: 8, 2: 16, 1: 32}.get(itemsize, 8)


# ---------------------------------------------------------------------------
# Kernels
# ---------------------------------------------------------------------------
def _fused_bn_kernel(x_ref, gamma_ref, beta_ref, y_ref, mean_ref, var_ref):
    """Single-sweep BN on a VMEM-resident (N, c_tile, HW) channel stripe.

    Exact two-pass statistics (mean, then E[(x-mean)^2]) from the resident
    copy: 1 HBM read + 1 HBM write total, no E[x^2]-mean^2 cancellation.
    """
    x = x_ref[...].astype(jnp.float32)                        # (N, ct, HW)
    m = jnp.float32(x.shape[0] * x.shape[2])
    mean = jnp.sum(jnp.sum(x, axis=2, keepdims=True),
                   axis=0, keepdims=True) / m                 # (1, ct, 1)
    xc = x - mean
    var = jnp.sum(jnp.sum(xc * xc, axis=2, keepdims=True),
                  axis=0, keepdims=True) / m                  # (1, ct, 1)
    inv_std = lax.rsqrt(var + EPS)
    gamma = gamma_ref[...][None]                              # (1, ct, 1)
    beta = beta_ref[...][None]                                # (1, ct, 1)
    y_ref[...] = (xc * (gamma * inv_std) + beta).astype(y_ref.dtype)
    mean_ref[...] = mean[0]                                   # (ct, 1)
    var_ref[...] = var[0]                                     # (ct, 1)


def _stats_kernel(x_ref, sum_ref, sumsq_ref, *, hw_total, thw):
    """Streaming per-(batch, channel) sum / sum-of-squares accumulation (f32)."""
    h = pl.program_id(2)

    @pl.when(h == 0)
    def _init():
        sum_ref[...] = jnp.zeros_like(sum_ref)
        sumsq_ref[...] = jnp.zeros_like(sumsq_ref)

    x = x_ref[...].astype(jnp.float32)                        # (1, ct, thw)
    if hw_total % thw != 0:
        # cdiv grid: the last H*W tile is partial -- zero the padded lanes.
        valid = hw_total - h * thw                            # >= thw except last tile
        lane = lax.broadcasted_iota(jnp.int32, x.shape, 2)
        x = jnp.where(lane < valid, x, 0.0)
    sum_ref[...] += jnp.sum(x, axis=2, keepdims=True)         # (1, ct, 1)
    sumsq_ref[...] += jnp.sum(x * x, axis=2, keepdims=True)


def _normalize_kernel(x_ref, scale_ref, shift_ref, y_ref):
    """y = x * scale + shift; scale/shift are (c_tile, 1): sublane-aligned."""
    x = x_ref[...].astype(jnp.float32)                        # (1, ct, thw)
    scale = scale_ref[...][None]                              # (1, ct, 1)
    shift = shift_ref[...][None]
    y_ref[...] = (x * scale + shift).astype(y_ref.dtype)


# ---------------------------------------------------------------------------
# Tile choosers
# ---------------------------------------------------------------------------
def _choose_fused_c_tile(N, C, HW, itemsize, sub, vmem_limit):
    """Largest channel tile whose (N, c_tile, HW) stripe fits VMEM.

    Accounts for double-buffered x and y blocks plus f32 temporaries.  Prefers a
    proper split (>= 2 grid steps) so both v7x TensorCores get work; returns None
    if no stripe fits (caller falls back to the streaming two-sweep path).
    """
    budget = vmem_limit - 2 * 1024 * 1024

    def fits(ct):
        stripe_in = N * ct * HW * itemsize
        stripe_f32 = N * ct * HW * 4
        # 2x x-input buffers + 2x y-output buffers + ~4 stripe-sized f32 temps
        return 4 * stripe_in + 4 * stripe_f32 <= budget

    for ct in sorted((c for c in range(sub, C, sub) if C % c == 0), reverse=True):
        if fits(ct):
            return ct
    if fits(C):
        return C
    return None


def _choose_two_sweep_tiles(C, HW, itemsize, tile_budget, sub):
    """Joint (c_tile, thw) choice for the streaming path.

    c_tile: full C, or a multiple-of-`sub` divisor (>= 2 'parallel' channel tiles
    when possible).  thw: largest multiple of 128 under the per-buffer budget;
    partial tail tiles are masked in the stats kernel, so HW does NOT need to be a
    multiple of thw (or of 128).
    """
    c_tile = C
    for c in sorted((c for c in range(sub, C, sub) if C % c == 0), reverse=True):
        if c * 128 * itemsize <= tile_budget:
            c_tile = c
            break
    hw_pad = -(-HW // 128) * 128
    max_lanes = max(128, (tile_budget // max(c_tile * itemsize, 1)) // 128 * 128)
    thw = HW if (HW <= 128 or hw_pad <= max_lanes) else max_lanes
    return c_tile, thw


# ---------------------------------------------------------------------------
# Forward wrapper
# ---------------------------------------------------------------------------
def bn_layer_forward(x_nchw, gamma, beta, moving_mean, moving_var,
                     *, force_two_sweep=False, tile_budget=None):
    """Training-mode BN forward. Returns (y, new_moving_mean, new_moving_var)."""
    N, C, H, W = x_nchw.shape
    HW = H * W
    x = x_nchw.reshape(N, C, HW)              # NCHW -> (N, C, H*W): free reshape
    itemsize = jnp.dtype(x.dtype).itemsize
    sub = _sublane_multiple(itemsize)

    vmem_limit, default_budget = _vmem_limit_and_tile_budget()
    if tile_budget is None:
        tile_budget = default_budget

    gamma_c1 = gamma.reshape(C, 1).astype(jnp.float32)
    beta_c1 = beta.reshape(C, 1).astype(jnp.float32)

    c_fused = None if force_two_sweep else _choose_fused_c_tile(
        N, C, HW, itemsize, sub, vmem_limit)

    if c_fused is not None:
        # ---------- fused single-sweep path: 1 HBM read + 1 HBM write ----------
        grid = (C // c_fused,)
        x_spec = pl.BlockSpec((N, c_fused, HW), lambda c: (0, c, 0))
        cvec_spec = pl.BlockSpec((c_fused, 1), lambda c: (c, 0))
        y, mean_c1, var_c1 = pl.pallas_call(
            _fused_bn_kernel,
            grid=grid,
            in_specs=[x_spec, cvec_spec, cvec_spec],
            out_specs=(x_spec, cvec_spec, cvec_spec),
            out_shape=(
                jax.ShapeDtypeStruct((N, C, HW), x.dtype),
                jax.ShapeDtypeStruct((C, 1), jnp.float32),
                jax.ShapeDtypeStruct((C, 1), jnp.float32),
            ),
            compiler_params=pltpu.CompilerParams(
                dimension_semantics=("parallel",),
                vmem_limit_bytes=vmem_limit,
            ),
        )(x, gamma_c1, beta_c1)
        mean = mean_c1.reshape(1, C)
        var = var_c1.reshape(1, C)
    else:
        # ---------- streaming two-sweep path (stripe does not fit VMEM) --------
        c_tile, thw = _choose_two_sweep_tiles(C, HW, itemsize, tile_budget, sub)
        num_hw = -(-HW // thw)
        grid = (C // c_tile, N, num_hw)
        x_spec = pl.BlockSpec((1, c_tile, thw), lambda c, n, h: (n, c, h))
        acc_spec = pl.BlockSpec((1, c_tile, 1), lambda c, n, h: (n, c, 0))

        # pass 1: per-(batch, channel) partial sums. Both the channel and batch
        # grid axes are 'parallel' (v7x megacore); only the H*W axis accumulates.
        sum_p, sumsq_p = pl.pallas_call(
            functools.partial(_stats_kernel, hw_total=HW, thw=thw),
            grid=grid,
            in_specs=[x_spec],
            out_specs=(acc_spec, acc_spec),
            out_shape=(
                jax.ShapeDtypeStruct((N, C, 1), jnp.float32),
                jax.ShapeDtypeStruct((N, C, 1), jnp.float32),
            ),
            compiler_params=pltpu.CompilerParams(
                dimension_semantics=("parallel", "parallel", "arbitrary"),
                vmem_limit_bytes=vmem_limit,
            ),
        )(x)

        # tiny per-channel finalize (hoisted out of the hot loops).
        # NOTE: E[x^2]-mean^2 in f32; the fused path uses the exact centered form.
        # TODO(synk): shifted/Welford accumulation here if |mean| >> std matters.
        M = N * HW
        sum_c = jnp.sum(sum_p[:, :, 0], axis=0, keepdims=True)        # (1, C)
        sumsq_c = jnp.sum(sumsq_p[:, :, 0], axis=0, keepdims=True)    # (1, C)
        mean = sum_c / M
        var = jnp.maximum(sumsq_c / M - mean * mean, 0.0)
        scale = gamma_c1 * lax.rsqrt(var + EPS).reshape(C, 1)         # (C, 1)
        shift = beta_c1 - mean.reshape(C, 1) * scale                  # (C, 1)

        # pass 2: y = x * scale + shift (fully parallel, pipelined).
        svec_spec = pl.BlockSpec((c_tile, 1), lambda c, n, h: (c, 0))
        y = pl.pallas_call(
            _normalize_kernel,
            grid=grid,
            in_specs=[x_spec, svec_spec, svec_spec],
            out_specs=x_spec,
            out_shape=jax.ShapeDtypeStruct((N, C, HW), x.dtype),
            compiler_params=pltpu.CompilerParams(
                dimension_semantics=("parallel", "parallel", "parallel"),
                vmem_limit_bytes=vmem_limit,
            ),
        )(x, scale, shift)

    y_nchw = y.reshape(N, C, H, W)

    # moving-stat update (training mode), matching the module's convention.
    mean4 = mean.reshape(1, C, 1, 1).astype(moving_mean.dtype)
    var4 = var.reshape(1, C, 1, 1).astype(moving_var.dtype)
    new_mm = MOMENTUM * moving_mean + (1.0 - MOMENTUM) * mean4
    new_mv = MOMENTUM * moving_var + (1.0 - MOMENTUM) * var4
    return y_nchw, new_mm, new_mv


# ---------------------------------------------------------------------------
# Reference + self-test
# ---------------------------------------------------------------------------
def _reference(x, gamma, beta, moving_mean, moving_var):
    """Pure-JAX reference matching the PyTorch batch_norm (is_train=True)."""
    x_mean = jnp.mean(x, axis=(0, 2, 3), keepdims=True)
    x_var = jnp.mean((x - x_mean) ** 2, axis=(0, 2, 3), keepdims=True)
    x_hat = (x - x_mean) / jnp.sqrt(x_var + EPS)
    out = gamma * x_hat + beta
    new_mm = MOMENTUM * moving_mean + (1 - MOMENTUM) * x_mean
    new_mv = MOMENTUM * moving_var + (1 - MOMENTUM) * x_var
    return out, new_mm, new_mv


def _check(shape, key, *, force_two_sweep=False, tile_budget=None,
           random_affine=False):
    kx, kg, kb = jax.random.split(key, 3)
    N, C, H, W = shape
    x = jax.random.normal(kx, shape, dtype=jnp.float32)
    pshape = (1, C, 1, 1)
    if random_affine:
        gamma = 0.5 + jax.random.uniform(kg, pshape, dtype=jnp.float32)
        beta = jax.random.normal(kb, pshape, dtype=jnp.float32)
    else:   # BnLayer.__init__ parameter initialization
        gamma = jnp.ones(pshape, jnp.float32)
        beta = jnp.zeros(pshape, jnp.float32)
    moving_mean = jnp.zeros(pshape, jnp.float32)
    moving_var = jnp.ones(pshape, jnp.float32)

    y, mm, mv = bn_layer_forward(x, gamma, beta, moving_mean, moving_var,
                                 force_two_sweep=force_two_sweep,
                                 tile_budget=tile_budget)
    jax.block_until_ready((y, mm, mv))

    y_r, mm_r, mv_r = _reference(x, gamma, beta, moving_mean, moving_var)
    assert jnp.allclose(y, y_r, atol=1e-4, rtol=1e-4), "y mismatch"
    assert jnp.allclose(mm, mm_r, atol=1e-5, rtol=1e-5), "moving_mean mismatch"
    assert jnp.allclose(mv, mv_r, atol=1e-5, rtol=1e-5), "moving_var mismatch"


if __name__ == "__main__":
    root = jax.random.PRNGKey(0)
    k1, k2, k3 = jax.random.split(root, 3)

    # 1) module-sized input, default (fused single-sweep) path.
    _check((2, 4, 16, 16), k1)

    # 2) forced streaming two-sweep path with a tiny tile budget and a
    #    non-multiple-of-128 H*W, exercising the masked partial tail tiles
    #    and the per-batch partial-sum accumulation.
    _check((2, 8, 45, 45), k2, force_two_sweep=True, tile_budget=4096,
           random_affine=True)

    # 3) fused path with >= 2 channel tiles (v7x-style parallel channel split).
    _check((2, 16, 8, 16), k3, random_affine=True)

    print("KERNEL_OK")
</pallas_src>

<mosaic_0001>
module attributes {stable_mosaic.version = 11 : i64} {
  func.func @_fused_bn_kernel(%arg0: i32, %arg1: memref<2x4x256xf32, #tpu.memory_space<vmem>>, %arg2: memref<4x1xf32, #tpu.memory_space<vmem>>, %arg3: memref<4x1xf32, #tpu.memory_space<vmem>>, %arg4: memref<2x4x256xf32, #tpu.memory_space<vmem>>, %arg5: memref<4x1xf32, #tpu.memory_space<vmem>>, %arg6: memref<4x1xf32, #tpu.memory_space<vmem>>) attributes {dimension_semantics = [#tpu.dimension_semantics<parallel>], iteration_bounds = array<i64: 1>, scalar_prefetch = 0 : i64, scratch_operands = 0 : i64, tpu.core_type = #tpu.core_type<tc>, window_params = [{transform_indices = @transform_0, window_bounds = array<i64: 2, 4, 256>}, {transform_indices = @transform_1, window_bounds = array<i64: 4, 1>}, {transform_indices = @transform_2, window_bounds = array<i64: 4, 1>}, {transform_indices = @transform_3, window_bounds = array<i64: 2, 4, 256>}, {transform_indices = @transform_4, window_bounds = array<i64: 4, 1>}, {transform_indices = @transform_5, window_bounds = array<i64: 4, 1>}]} {
    %c0 = arith.constant 0 : index
    %c0_0 = arith.constant 0 : index
    %c0_1 = arith.constant 0 : index
    %0 = vector.load %arg1[%c0, %c0_0, %c0_1] : memref<2x4x256xf32, #tpu.memory_space<vmem>>, vector<2x4x256xf32>
    %cst = arith.constant dense<0.000000e+00> : vector<2x4xf32>
    %1 = vector.multi_reduction <add>, %0, %cst [2] : vector<2x4x256xf32> to vector<2x4xf32>
    %2 = vector.shape_cast %1 : vector<2x4xf32> to vector<2x4x1xf32>
    %cst_2 = arith.constant dense<0.000000e+00> : vector<4x1xf32>
    %3 = vector.multi_reduction <add>, %2, %cst_2 [0] : vector<2x4x1xf32> to vector<4x1xf32>
    %4 = vector.shape_cast %3 : vector<4x1xf32> to vector<1x4x1xf32>
    %cst_3 = arith.constant 5.120000e+02 : f32
    %5 = vector.broadcast %cst_3 : f32 to vector<1x4x1xf32>
    %6 = arith.divf %4, %5 : vector<1x4x1xf32>
    %7 = vector.broadcast %6 : vector<1x4x1xf32> to vector<2x4x256xf32>
    %8 = arith.subf %0, %7 : vector<2x4x256xf32>
    %9 = arith.mulf %8, %8 : vector<2x4x256xf32>
    %cst_4 = arith.constant dense<0.000000e+00> : vector<2x4xf32>
    %10 = vector.multi_reduction <add>, %9, %cst_4 [2] : vector<2x4x256xf32> to vector<2x4xf32>
    %11 = vector.shape_cast %10 : vector<2x4xf32> to vector<2x4x1xf32>
    %cst_5 = arith.constant dense<0.000000e+00> : vector<4x1xf32>
    %12 = vector.multi_reduction <add>, %11, %cst_5 [0] : vector<2x4x1xf32> to vector<4x1xf32>
    %13 = vector.shape_cast %12 : vector<4x1xf32> to vector<1x4x1xf32>
    %cst_6 = arith.constant 5.120000e+02 : f32
    %14 = vector.broadcast %cst_6 : f32 to vector<1x4x1xf32>
    %15 = arith.divf %13, %14 : vector<1x4x1xf32>
    %cst_7 = arith.constant 9.99999974E-6 : f32
    %16 = vector.broadcast %cst_7 : f32 to vector<1x4x1xf32>
    %17 = arith.addf %15, %16 : vector<1x4x1xf32>
    %18 = math.rsqrt %17 : vector<1x4x1xf32>
    %c0_8 = arith.constant 0 : index
    %c0_9 = arith.constant 0 : index
    %19 = vector.load %arg2[%c0_8, %c0_9] : memref<4x1xf32, #tpu.memory_space<vmem>>, vector<4x1xf32>
    %20 = vector.shape_cast %19 : vector<4x1xf32> to vector<1x4x1xf32>
    %c0_10 = arith.constant 0 : index
    %c0_11 = arith.constant 0 : index
    %21 = vector.load %arg3[%c0_10, %c0_11] : memref<4x1xf32, #tpu.memory_space<vmem>>, vector<4x1xf32>
    %22 = vector.shape_cast %21 : vector<4x1xf32> to vector<1x4x1xf32>
    %23 = arith.mulf %20, %18 : vector<1x4x1xf32>
    %24 = vector.broadcast %23 : vector<1x4x1xf32> to vector<2x4x256xf32>
    %25 = arith.mulf %8, %24 : vector<2x4x256xf32>
    %26 = vector.broadcast %22 : vector<1x4x1xf32> to vector<2x4x256xf32>
    %27 = arith.addf %25, %26 : vector<2x4x256xf32>
    %c0_12 = arith.constant 0 : index
    %c0_13 = arith.constant 0 : index
    %c0_14 = arith.constant 0 : index
    %28 = vector.load %arg4[%c0_12, %c0_13, %c0_14] : memref<2x4x256xf32, #tpu.memory_space<vmem>>, vector<2x4x256xf32>
    tpu.vector_store %arg4[%c0_12, %c0_13, %c0_14], %27 {strides = array<i32>} : memref<2x4x256xf32, #tpu.memory_space<vmem>>, vector<2x4x256xf32>,
    %29 = vector.shape_cast %6 : vector<1x4x1xf32> to vector<4x1xf32>
    %c0_15 = arith.constant 0 : index
    %c0_16 = arith.constant 0 : index
    %30 = vector.load %arg5[%c0_15, %c0_16] : memref<4x1xf32, #tpu.memory_space<vmem>>, vector<4x1xf32>
    tpu.vector_store %arg5[%c0_15, %c0_16], %29 {strides = array<i32>} : memref<4x1xf32, #tpu.memory_space<vmem>>, vector<4x1xf32>,
    %31 = vector.shape_cast %15 : vector<1x4x1xf32> to vector<4x1xf32>
    %c0_17 = arith.constant 0 : index
    %c0_18 = arith.constant 0 : index
    %32 = vector.load %arg6[%c0_17, %c0_18] : memref<4x1xf32, #tpu.memory_space<vmem>>, vector<4x1xf32>
    tpu.vector_store %arg6[%c0_17, %c0_18], %31 {strides = array<i32>} : memref<4x1xf32, #tpu.memory_space<vmem>>, vector<4x1xf32>,
    return
  }
  func.func @transform_0(%arg0: i32) -> (i32, i32, i32) {
    %c0_i32 = arith.constant 0 : i32
    %c0_i32_0 = arith.constant 0 : i32
    %c0_i32_1 = arith.constant 0 : i32
    return %c0_i32, %arg0, %c0_i32_0 : i32, i32, i32
  }
  func.func @transform_1(%arg0: i32) -> (i32, i32) {
    %c0_i32 = arith.constant 0 : i32
    %c0_i32_0 = arith.constant 0 : i32
    return %arg0, %c0_i32 : i32, i32
  }
  func.func @transform_2(%arg0: i32) -> (i32, i32) {
    %c0_i32 = arith.constant 0 : i32
    %c0_i32_0 = arith.constant 0 : i32
    return %arg0, %c0_i32 : i32, i32
  }
  func.func @transform_3(%arg0: i32) -> (i32, i32, i32) {
    %c0_i32 = arith.constant 0 : i32
    %c0_i32_0 = arith.constant 0 : i32
    %c0_i32_1 = arith.constant 0 : i32
    return %c0_i32, %arg0, %c0_i32_0 : i32, i32, i32
  }
  func.func @transform_4(%arg0: i32) -> (i32, i32) {
    %c0_i32 = arith.constant 0 : i32
    %c0_i32_0 = arith.constant 0 : i32
    return %arg0, %c0_i32 : i32, i32
  }
  func.func @transform_5(%arg0: i32) -> (i32, i32) {
    %c0_i32 = arith.constant 0 : i32
    %c0_i32_0 = arith.constant 0 : i32
    return %arg0, %c0_i32 : i32, i32
  }
}

</mosaic_0001>

<llo_original>
// kernel: tpu_custom_call.1
$region0: #{tpu_custom_call.1}
  #allocation0 [shape = 'u32[]', space=smem, size = 0x4, offset = 0x4, fixed_abs, tag = 'smem constant byte address 0x4 - core index']
  #allocation1 [shape = 'u32[72,128]{1,0:T(1,128)}', space=vmem, size = 0x9000, scoped, tag = 'internal scratch']
  %s0 = inlined_call_operand.hbm [shape: f32[2,4,256], index: 0, kind: input, shape index: {}]
  %s1 = inlined_call_operand.vmem [shape: f32[4,1], index: 1, kind: input, shape index: {}]
  %s2 = inlined_call_operand.vmem [shape: f32[4,1], index: 2, kind: input, shape index: {}]
  %s3 = inlined_call_operand.hbm [shape: f32[2,4,256], index: 3, kind: output, shape index: {0}]
  %s4 = inlined_call_operand.vmem [shape: f32[4,1], index: 4, kind: output, shape index: {1}]
  %s5 = inlined_call_operand.vmem [shape: f32[4,1], index: 5, kind: output, shape index: {2}]
  %6 = xla_tuple %s3, %s4, %s5
  %s7 = sld [smem:[#allocation0]]
  $region42: #{tpu_custom_call.1} parent=0
    _
  %s9 = ssub.s32 1, %s7
  %s10 = scalar_select 0, %s9, %s7
  $region1: #{tpu_custom_call.1} parent=0
    #allocation2 [shape = 'u8[8192]{0}', space=vmem, size = 0x2000, scoped, tag = 'input window, operand 0, single buffered']
    #allocation3 [shape = 's32[1]{0}', space=sflag, size = 0x4, scoped, tag = 'scoped memory for tpu_custom_call.1']
    #allocation4 [shape = 's32[1]{0}', space=sflag, size = 0x4, scoped, tag = 'scoped memory for tpu_custom_call.1']
    #allocation5 [shape = 'u8[8192]{0}', space=vmem, size = 0x2000, scoped, tag = 'output window, operand 0, single buffered']
    %11 = vsyncpa [#allocation3], 0
    %12 = vsyncpa [#allocation4], 0
    // Predicated region
    $region2: #{tpu_custom_call.1} parent=1 // pred_check
      _
    $region3: #{tpu_custom_call.1} parent=1 // pred_check_branch
      %14 = sbr.rel (0) target = $region5
    $region4: #{tpu_custom_call.1} parent=1 // pred_region
      %16 = vsyncadd [#allocation3], 0
      %s17 = sshll.u32 %s0, 4
      %s18 = int_to_ptr.hbm [resolvable:$true] %s17
      %s19 = sshll.u32 [#allocation2], 4
      %s20 = int_to_ptr.vmem [resolvable:$true] %s19
      %25 = dma.hbm_to_vmem [thread:$0]  %s18, 256, %s20, [#allocation3], 128, 128, 8
    $region5: #{tpu_custom_call.1} parent=1 // pred_fallthru
      _
    // Predicated region
    $region6: #{tpu_custom_call.1} parent=1 // pred_check
      _
    $region7: #{tpu_custom_call.1} parent=1 // pred_check_branch
      %27 = sbr.rel (0) target = $region9
    $region8: #{tpu_custom_call.1} parent=1 // pred_region
      _
    $region9: #{tpu_custom_call.1} parent=1 // pred_fallthru
      _
    // Predicated region
    $region10: #{tpu_custom_call.1} parent=1 // pred_check
      _
    $region11: #{tpu_custom_call.1} parent=1 // pred_check_branch
      %29 = sbr.rel (0) target = $region13
    $region12: #{tpu_custom_call.1} parent=1 // pred_region
      _
    $region13: #{tpu_custom_call.1} parent=1 // pred_fallthru
      _
    // Predicated region
    $region14: #{tpu_custom_call.1} parent=1 // pred_check
      _
    $region15: #{tpu_custom_call.1} parent=1 // pred_check_branch
      %31 = sbr.rel (0) target = $region17
    $region16: #{tpu_custom_call.1} parent=1 // pred_region
      %33 = dma.done [#allocation3], 256
    $region17: #{tpu_custom_call.1} parent=1 // pred_fallthru
      _
    %v34 = vld [vmem:[#allocation2] sm:$0xff]
    %v35 = vld [vmem:[#allocation2 + $0x8] sm:$0xff]
    %38 = vst [vmem:[#allocation1] ss:$2 sm:$0xff] %v34
    %v39 = vld.sshfl [vmem:[#allocation1] sm:$0xff pattern:$0x75316420]
    %v40 = vld.sshfl [vmem:[#allocation1 + $0x8] sm:$0xff pattern:$0x75316420]
    %s41 = scalar_lea.vmem [#allocation1], 16
    %42 = vst [vmem:[%s41] ss:$2 sm:$0xff] %v35
    %v43 = vld.sshfl [vmem:[#allocation1 + $0x10] sm:$0xff pattern:$0x75316420]
    %v44 = vld.sshfl [vmem:[#allocation1 + $0x18] sm:$0xff pattern:$0x75316420]
    %vm49 = vcmask 1043456
    %v50 = vsel %vm49, %v39, 0.0
    %v51 = vsel %vm49, %v40, 0.0
    %v52 = vadd.f32 %v50, %v51
    %53 = vadd.xlane.f32.xlu0 %v52
    %v54 = vpop.xlane.xlu0 %53
    %v55 = vsel %vm49, %v43, 0.0
    %v56 = vsel %vm49, %v44, 0.0
    %v57 = vadd.f32 %v55, %v56
    %58 = vadd.xlane.f32.xlu0 %v57
    %v59 = vpop.xlane.xlu0 %58
    %v60 = vsel %vm49, %v54, 0.0
    %v61 = vsel %vm49, %v59, 0.0
    %v62 = vadd.f32 %v60, %v61
    %v63 = vrcp.pop 512.0
    %v64 = vmul.f32 512.0, %v63
    %v65 = vsub.f32 1.0, %v64
    %v66 = vmul.f32 %v63, %v65
    %v67 = vadd.f32 %v63, %v66
    %vm68 = vweird.f32 %v63
    %v69 = vsel %vm68, %v63, %v67
    %v70 = vmul.f32 %v62, %v69
    %v73 = vunpack.c.l.s4 839922192
    %v74 = vunpack.c.0.s8 %v73
    %v75 = vperm.slane %v70, %v74
    %v77 = vsub.f32 %v34, %v75
    %v78 = vsub.f32 %v35, %v75
    %v79 = vmul.f32 %v77, %v77
    %v80 = vmul.f32 %v78, %v78
    %83 = vst [vmem:[#allocation1] ss:$2 sm:$0xff] %v79
    %v84 = vld.sshfl [vmem:[#allocation1] sm:$0xff pattern:$0x75316420]
    %v85 = vld.sshfl [vmem:[#allocation1 + $0x8] sm:$0xff pattern:$0x75316420]
    %s86 = scalar_lea.vmem [#allocation1], 16
    %87 = vst [vmem:[%s86] ss:$2 sm:$0xff] %v80
    %v88 = vld.sshfl [vmem:[#allocation1 + $0x10] sm:$0xff pattern:$0x75316420]
    %v89 = vld.sshfl [vmem:[#allocation1 + $0x18] sm:$0xff pattern:$0x75316420]
    %v94 = vsel %vm49, %v84, 0.0
    %v95 = vsel %vm49, %v85, 0.0
    %v96 = vadd.f32 %v94, %v95
    %97 = vadd.xlane.f32.xlu0 %v96
    %v98 = vpop.xlane.xlu0 %97
    %v99 = vsel %vm49, %v88, 0.0
    %v100 = vsel %vm49, %v89, 0.0
    %v101 = vadd.f32 %v99, %v100
    %102 = vadd.xlane.f32.xlu0 %v101
    %v103 = vpop.xlane.xlu0 %102
    %v104 = vsel %vm49, %v98, 0.0
    %v105 = vsel %vm49, %v103, 0.0
    %v106 = vadd.f32 %v104, %v105
    %v107 = vmul.f32 %v106, %v69
    %v108 = vadd.f32 %v107, 1e-05
    %v109 = vrsqrt.pop %v108
    %v110 = vmul.f32 %v109, %v108
    %v111 = vmul.f32 %v110, %v109
    %v112 = vmul.f32 0.5, %v111
    %v113 = vsub.f32 1.5, %v112
    %v114 = vmul.f32 %v109, %v113
    %vm115 = vweird.f32 %v108
    %vm116 = vweird.f32 %v109
    %vm117 = vmor %vm115, %vm116
    %v118 = vsel %vm117, %v109, %v114
    %v119 = vld [vmem:[%s1] sm:$0xf]
    %v120 = vld [vmem:[%s2] sm:$0xf]
    %v121 = vmul.f32 %v119, %v118
    %123 = vset.pattern.permute.xlu0 0
    %124 = vperm.xlu0 %123, %v121
    %v125 = vpop.permute.xlu0 %124
    %v127 = vunpack.c.l.s4 839922192
    %v128 = vunpack.c.0.s8 %v127
    %v129 = vperm.slane %v125, %v128
    %v131 = vmul.f32 %v77, %v129
    %v132 = vmul.f32 %v78, %v129
    %134 = vset.pattern.permute.xlu0 0
    %135 = vperm.xlu0 %134, %v120
    %v136 = vpop.permute.xlu0 %135
    %v138 = vunpack.c.l.s4 839922192
    %v139 = vunpack.c.0.s8 %v138
    %v140 = vperm.slane %v136, %v139
    %v142 = vadd.f32 %v131, %v140
    %v143 = vadd.f32 %v132, %v140
    %144 = vst [vmem:[#allocation5] sm:$0xff] %v142
    %145 = vst [vmem:[#allocation5 + $0x8] sm:$0xff] %v143
    %vm146 = vcmask 3072
    %147 = vst.msk [vmem:[%s4] sm:$0xf] %vm146, %v70
    %148 = vst.msk [vmem:[%s5] sm:$0xf] %vm146, %v107
    // Predicated region
    $region18: #{tpu_custom_call.1} parent=1 // pred_check
      _
    $region19: #{tpu_custom_call.1} parent=1 // pred_check_branch
      %150 = sbr.rel (0) target = $region21
    $region20: #{tpu_custom_call.1} parent=1 // pred_region
      %152 = vsyncadd [#allocation4], 0
      %s153 = sshll.u32 [#allocation5], 4
      %s154 = int_to_ptr.vmem [resolvable:$true] %s153
      %s155 = sshll.u32 %s3, 4
      %s156 = int_to_ptr.hbm [resolvable:$true] %s155
      %161 = dma.vmem_to_hbm [thread:$0]  %s154, 256, %s156, [#allocation4], 128, 128, 8
    $region21: #{tpu_custom_call.1} parent=1 // pred_fallthru
      _
    // Predicated region
    $region22: #{tpu_custom_call.1} parent=1 // pred_check
      _
    $region23: #{tpu_custom_call.1} parent=1 // pred_check_branch
      %163 = sbr.rel (0) target = $region25
    $region24: #{tpu_custom_call.1} parent=1 // pred_region
      _
    $region25: #{tpu_custom_call.1} parent=1 // pred_fallthru
      _
    // Predicated region
    $region26: #{tpu_custom_call.1} parent=1 // pred_check
      _
    $region27: #{tpu_custom_call.1} parent=1 // pred_check_branch
      %165 = sbr.rel (0) target = $region29
    $region28: #{tpu_custom_call.1} parent=1 // pred_region
      _
    $region29: #{tpu_custom_call.1} parent=1 // pred_fallthru
      _
    // Predicated region
    $region30: #{tpu_custom_call.1} parent=1 // pred_check
      _
    $region31: #{tpu_custom_call.1} parent=1 // pred_check_branch
      %167 = sbr.rel (0) target = $region33
    $region32: #{tpu_custom_call.1} parent=1 // pred_region
      %169 = dma.done [#allocation4], 256
    $region33: #{tpu_custom_call.1} parent=1 // pred_fallthru
      _
    // Predicated region
    $region34: #{tpu_custom_call.1} parent=1 // pred_check
      _
    $region35: #{tpu_custom_call.1} parent=1 // pred_check_branch
      %171 = sbr.rel (0) target = $region37
    $region36: #{tpu_custom_call.1} parent=1 // pred_region
      _
    $region37: #{tpu_custom_call.1} parent=1 // pred_fallthru
      _
    // Predicated region
    $region38: #{tpu_custom_call.1} parent=1 // pred_check
      _
    $region39: #{tpu_custom_call.1} parent=1 // pred_check_branch
      %173 = sbr.rel (0) target = $region41
    $region40: #{tpu_custom_call.1} parent=1 // pred_region
      _
    $region41: #{tpu_custom_call.1} parent=1 // pred_fallthru
      _
    %174 = vsyncpa [#allocation3], 1
    %175 = vsyncpa [#allocation4], 1

</llo_original>
